<compile_context>
chip_gen: v7x
topology: tpu7x:2x2x1
jax: 0.10.0
libtpu: 0.0.40
codegen_flags: <defaults>
</compile_context>

<pallas_src>
import functools

import jax
import jax.numpy as jnp
from jax.experimental import pallas as pl
from jax.experimental.pallas import tpu as pltpu

NEG_SLOPE = 0.2
BN_EPS = 1e-5
MXU_DTYPE = jnp.bfloat16       # MXU operand dtype (f32 accumulation everywhere)
MAX_TM = 512                   # M-tile upper bound (fits VMEM on v7x's 64 MiB)


def _round_up(x, m):
    return ((x + m - 1) // m) * m


# ---------------------------------------------------------------------------
# Pallas kernels
# ---------------------------------------------------------------------------
def _conv_kernel(p_ref, w_ref, y_ref, *, fuse_lrelu):
    """One M-tile of: out = patches @ W (bf16 in, f32 acc), optional LeakyReLU."""
    y = jnp.dot(p_ref[...], w_ref[...], preferred_element_type=jnp.float32)
    if fuse_lrelu:
        y = jnp.where(y > 0, y, NEG_SLOPE * y)
    y_ref[...] = y


def _conv_stats_kernel(p_ref, w_ref, y_ref, stats_ref):
    """Conv matmul tile + fused per-channel partial BN statistics.

    stats block is (1, 8, C_pad): row 0 = sum(y), row 1 = sum(y*y), rest zero.
    Padded M rows of the patch tile are all-zero, so they contribute exactly
    zero to both sums (the wrapper divides by the *real* row count).
    """
    y = jnp.dot(p_ref[...], w_ref[...], preferred_element_type=jnp.float32)
    y_ref[...] = y
    s = jnp.sum(y, axis=0, keepdims=True)          # (1, C_pad)
    sq = jnp.sum(y * y, axis=0, keepdims=True)     # (1, C_pad)
    row = jax.lax.broadcasted_iota(jnp.int32, (8, y.shape[1]), 0)
    stats_ref[0, :, :] = jnp.where(row == 0, s, jnp.where(row == 1, sq, 0.0))


def _affine_lrelu_kernel(x_ref, sc_ref, sh_ref, o_ref):
    """Per-channel affine (precomputed BN scale/shift) + LeakyReLU(0.2)."""
    y = x_ref[...] * sc_ref[...] + sh_ref[...]
    o_ref[...] = jnp.where(y > 0, y, NEG_SLOPE * y)


# ---------------------------------------------------------------------------
# Glue: im2col + pallas_call wrappers
# ---------------------------------------------------------------------------
def _im2col(x_nhwc, k=4, s=2, p=1):
    N, H, W, C = x_nhwc.shape
    xp = jnp.pad(x_nhwc, ((0, 0), (p, p), (p, p), (0, 0)))
    OH = (H + 2 * p - k) // s + 1
    OW = (W + 2 * p - k) // s + 1
    patches = []
    for i in range(k):            # kernel row
        for j in range(k):        # kernel col
            patches.append(xp[:, i:i + s * OH:s, j:j + s * OW:s, :])  # (N,OH,OW,C)
    pat = jnp.stack(patches, axis=3)                  # (N, OH, OW, k*k, C)
    return pat.reshape(N * OH * OW, k * k * C), (N, OH, OW)


def _conv_layer(x_nhwc, w_oihw, *, fuse_lrelu, compute_stats):
    patches, (N, OH, OW) = _im2col(x_nhwc)
    M, K = patches.shape
    cout = w_oihw.shape[0]

    # Lane-align K and Cout; tile M (multiple of 8, capped for VMEM).
    K_pad = _round_up(K, 128)
    C_pad = _round_up(cout, 128)
    TM = min(MAX_TM, _round_up(M, 8))
    M_pad = _round_up(M, TM)
    n_tiles = M_pad // TM

    patches = jnp.pad(patches, ((0, M_pad - M), (0, K_pad - K))).astype(MXU_DTYPE)
    # PyTorch weight (Cout, Cin, kH, kW) -> (kH, kW, Cin, Cout) -> matrix
    w_mat = jnp.transpose(w_oihw, (2, 3, 1, 0)).reshape(K, cout).astype(jnp.float32)
    w_mat = jnp.pad(w_mat, ((0, K_pad - K), (0, C_pad - cout))).astype(MXU_DTYPE)

    cost = pl.CostEstimate(
        flops=2 * M_pad * K_pad * C_pad,
        transcendentals=0,
        bytes_accessed=M_pad * K_pad * 2 + K_pad * C_pad * 2 + M_pad * C_pad * 4,
    )
    cparams = pltpu.CompilerParams(dimension_semantics=("parallel",))

    patch_spec = pl.BlockSpec((TM, K_pad), lambda i: (i, 0))
    w_spec = pl.BlockSpec((K_pad, C_pad), lambda i: (0, 0))   # resident weights
    y_spec = pl.BlockSpec((TM, C_pad), lambda i: (i, 0))

    if compute_stats:
        y, stats = pl.pallas_call(
            _conv_stats_kernel,
            grid=(n_tiles,),
            in_specs=[patch_spec, w_spec],
            out_specs=(y_spec, pl.BlockSpec((1, 8, C_pad), lambda i: (i, 0, 0))),
            out_shape=(jax.ShapeDtypeStruct((M_pad, C_pad), jnp.float32),
                       jax.ShapeDtypeStruct((n_tiles, 8, C_pad), jnp.float32)),
            compiler_params=cparams,
            cost_estimate=cost,
        )(patches, w_mat)
        tot = jnp.sum(stats, axis=0)            # (8, C_pad) — tiny reduction
        ch_sum, ch_sumsq = tot[0], tot[1]       # (C_pad,)
    else:
        y = pl.pallas_call(
            functools.partial(_conv_kernel, fuse_lrelu=fuse_lrelu),
            grid=(n_tiles,),
            in_specs=[patch_spec, w_spec],
            out_specs=y_spec,
            out_shape=jax.ShapeDtypeStruct((M_pad, C_pad), jnp.float32),
            compiler_params=cparams,
            cost_estimate=cost,
        )(patches, w_mat)
        ch_sum = ch_sumsq = None

    meta = dict(N=N, OH=OH, OW=OW, M=M, cout=cout,
                TM=TM, n_tiles=n_tiles, C_pad=C_pad)
    return y, (ch_sum, ch_sumsq), meta


def _bn_lrelu_apply(y_pad, ch_sum, ch_sumsq, gamma, beta, meta):
    """Training-mode BatchNorm (batch stats, eps=1e-5) + LeakyReLU, tiled over M.

    mean/var come from exact cross-tile sums (fused into the conv epilogue);
    per-channel scale/shift is O(C) wrapper math, the heavy pass is the tiled
    affine+LeakyReLU kernel (pure mem-bound VPU work).
    """
    M_pad, C_pad = y_pad.shape
    M, cout = meta["M"], meta["cout"]
    TM, n_tiles = meta["TM"], meta["n_tiles"]

    mean = ch_sum / M
    var = jnp.maximum(ch_sumsq / M - mean * mean, 0.0)   # biased (training) var
    inv = jax.lax.rsqrt(var + BN_EPS)
    g = jnp.pad(gamma.astype(jnp.float32), (0, C_pad - cout), constant_values=1.0)
    b = jnp.pad(beta.astype(jnp.float32), (0, C_pad - cout))
    scale = (g * inv).reshape(1, C_pad)
    shift = (b - mean * g * inv).reshape(1, C_pad)

    return pl.pallas_call(
        _affine_lrelu_kernel,
        grid=(n_tiles,),
        in_specs=[pl.BlockSpec((TM, C_pad), lambda i: (i, 0)),
                  pl.BlockSpec((1, C_pad), lambda i: (0, 0)),
                  pl.BlockSpec((1, C_pad), lambda i: (0, 0))],
        out_specs=pl.BlockSpec((TM, C_pad), lambda i: (i, 0)),
        out_shape=jax.ShapeDtypeStruct((M_pad, C_pad), jnp.float32),
        compiler_params=pltpu.CompilerParams(dimension_semantics=("parallel",)),
    )(y_pad, scale, shift)


def _strip(y_pad, meta):
    return y_pad[: meta["M"], : meta["cout"]].reshape(
        meta["N"], meta["OH"], meta["OW"], meta["cout"])


def net_ud_forward(x_nchw, params):
    """Forward pass of _netUD. Input/output NCHW."""
    x = jnp.transpose(x_nchw, (0, 2, 3, 1)).astype(jnp.float32)  # -> NHWC

    # Layer 1: conv + LeakyReLU (fused in the matmul kernel)
    y, _, m = _conv_layer(x, params["w1"], fuse_lrelu=True, compute_stats=False)
    x = _strip(y, m)

    # Layer 2: conv (stats fused) -> BN + LeakyReLU
    y, (s, sq), m = _conv_layer(x, params["w2"], fuse_lrelu=False, compute_stats=True)
    y = _bn_lrelu_apply(y, s, sq, params["g2"], params["b2"], m)
    x = _strip(y, m)

    # Layer 3: conv (stats fused) -> BN + LeakyReLU
    y, (s, sq), m = _conv_layer(x, params["w3"], fuse_lrelu=False, compute_stats=True)
    y = _bn_lrelu_apply(y, s, sq, params["g3"], params["b3"], m)
    x = _strip(y, m)

    return jnp.transpose(x, (0, 3, 1, 2))  # NHWC -> NCHW


# ---------------------------------------------------------------------------
# Pure-JAX reference (precision-matched: bf16 MXU operands, f32 accumulation)
# ---------------------------------------------------------------------------
def _ref_forward(x_nchw, params):
    def conv(x, w):
        return jax.lax.conv_general_dilated(
            x.astype(MXU_DTYPE), w.astype(MXU_DTYPE),
            window_strides=(2, 2), padding=((1, 1), (1, 1)),
            dimension_numbers=("NCHW", "OIHW", "NCHW"),
            preferred_element_type=jnp.float32)

    def bn(x, g, b):
        M = x.shape[0] * x.shape[2] * x.shape[3]
        s = jnp.sum(x, axis=(0, 2, 3))
        sq = jnp.sum(x * x, axis=(0, 2, 3))
        mean = s / M
        var = jnp.maximum(sq / M - mean * mean, 0.0)
        inv = jax.lax.rsqrt(var + BN_EPS)
        scale = (g * inv).reshape(1, -1, 1, 1)
        shift = (b - mean * g * inv).reshape(1, -1, 1, 1)
        return x * scale + shift

    lrelu = lambda v: jnp.where(v > 0, v, NEG_SLOPE * v)

    x = lrelu(conv(x_nchw.astype(jnp.float32), params["w1"]))
    x = lrelu(bn(conv(x, params["w2"]), params["g2"], params["b2"]))
    x = lrelu(bn(conv(x, params["w3"]), params["g3"], params["b3"]))
    return x


# ---------------------------------------------------------------------------
if __name__ == "__main__":
    # Small shapes consistent with the module: nc=3, ndf=8, 16x16 input.
    N, NC, NDF, H, W = 2, 3, 8, 16, 16
    key = jax.random.PRNGKey(0)
    k0, k1, k2, k3 = jax.random.split(key, 4)

    x = jax.random.normal(k0, (N, NC, H, W), dtype=jnp.float32)

    params = {
        # Conv weights (Cout, Cin, kH, kW), bias=False in the module.
        "w1": 0.05 * jax.random.normal(k1, (NDF * 2, NC, 4, 4), jnp.float32),
        "w2": 0.05 * jax.random.normal(k2, (NDF * 4, NDF * 2, 4, 4), jnp.float32),
        "w3": 0.05 * jax.random.normal(k3, (NDF * 8, NDF * 4, 4, 4), jnp.float32),
        # BatchNorm affine params at PyTorch defaults (gamma=1, beta=0).
        "g2": jnp.ones((NDF * 4,), jnp.float32),
        "b2": jnp.zeros((NDF * 4,), jnp.float32),
        "g3": jnp.ones((NDF * 8,), jnp.float32),
        "b3": jnp.zeros((NDF * 8,), jnp.float32),
    }

    out = jax.jit(net_ud_forward)(x, params)
    out = jax.block_until_ready(out)

    ref = _ref_forward(x, params)
    assert out.shape == (N, NDF * 8, H // 8, W // 8), out.shape
    assert jnp.allclose(out, ref, atol=2e-3, rtol=2e-3), float(
        jnp.max(jnp.abs(out - ref)))

    print("KERNEL_OK")
</pallas_src>

<mosaic_0001>
module attributes {stable_mosaic.version = 11 : i64} {
  func.func @_conv_kernel(%arg0: i32, %arg1: memref<128x128xbf16, #tpu.memory_space<vmem>>, %arg2: memref<128x128xbf16, #tpu.memory_space<vmem>>, %arg3: memref<128x128xf32, #tpu.memory_space<vmem>>) attributes {dimension_semantics = [#tpu.dimension_semantics<parallel>], iteration_bounds = array<i64: 1>, scalar_prefetch = 0 : i64, scratch_operands = 0 : i64, tpu.core_type = #tpu.core_type<tc>, window_params = [{transform_indices = @transform_0, window_bounds = array<i64: 128, 128>}, {pipeline_mode = #tpu.pipeline_mode<synchronous>, transform_indices = @transform_1, window_bounds = array<i64: 128, 128>}, {transform_indices = @transform_2, window_bounds = array<i64: 128, 128>}]} {
    %c0 = arith.constant 0 : index
    %c0_0 = arith.constant 0 : index
    %0 = vector.load %arg1[%c0, %c0_0] : memref<128x128xbf16, #tpu.memory_space<vmem>>, vector<128x128xbf16>
    %c0_1 = arith.constant 0 : index
    %c0_2 = arith.constant 0 : index
    %1 = vector.load %arg2[%c0_1, %c0_2] : memref<128x128xbf16, #tpu.memory_space<vmem>>, vector<128x128xbf16>
    %cst = arith.constant dense<0.000000e+00> : vector<128x128xf32>
    %2 = tpu.matmul %0, %1, %cst {dimension_numbers = #tpu.dot_dimension_numbers<[1], [0], [0], [1], [0, 0, 1, 1], [], []>} : vector<128x128xbf16>, vector<128x128xbf16>, vector<128x128xf32> -> vector<128x128xf32>
    %cst_3 = arith.constant 0.000000e+00 : f32
    %3 = vector.broadcast %cst_3 : f32 to vector<128x128xf32>
    %4 = arith.cmpf ogt, %2, %3 : vector<128x128xf32>
    %cst_4 = arith.constant 2.000000e-01 : f32
    %5 = vector.broadcast %cst_4 : f32 to vector<128x128xf32>
    %6 = arith.mulf %5, %2 : vector<128x128xf32>
    %7 = arith.select %4, %2, %6 : vector<128x128xi1>, vector<128x128xf32>
    %c0_5 = arith.constant 0 : index
    %c0_6 = arith.constant 0 : index
    %8 = vector.load %arg3[%c0_5, %c0_6] : memref<128x128xf32, #tpu.memory_space<vmem>>, vector<128x128xf32>
    tpu.vector_store %arg3[%c0_5, %c0_6], %7 {strides = array<i32>} : memref<128x128xf32, #tpu.memory_space<vmem>>, vector<128x128xf32>,
    return
  }
  func.func @transform_0(%arg0: i32) -> (i32, i32) {
    %c0_i32 = arith.constant 0 : i32
    %c0_i32_0 = arith.constant 0 : i32
    return %arg0, %c0_i32 : i32, i32
  }
  func.func @transform_1(%arg0: i32) -> (i32, i32) {
    %c0_i32 = arith.constant 0 : i32
    %c0_i32_0 = arith.constant 0 : i32
    %c0_i32_1 = arith.constant 0 : i32
    return %c0_i32, %c0_i32_0 : i32, i32
  }
  func.func @transform_2(%arg0: i32) -> (i32, i32) {
    %c0_i32 = arith.constant 0 : i32
    %c0_i32_0 = arith.constant 0 : i32
    return %arg0, %c0_i32 : i32, i32
  }
}

module attributes {stable_mosaic.version = 11 : i64} {
  func.func @_affine_lrelu_kernel(%arg0: i32, %arg1: memref<32x128xf32, #tpu.memory_space<vmem>>, %arg2: memref<1x128xf32, #tpu.memory_space<vmem>>, %arg3: memref<1x128xf32, #tpu.memory_space<vmem>>, %arg4: memref<32x128xf32, #tpu.memory_space<vmem>>) attributes {dimension_semantics = [#tpu.dimension_semantics<parallel>], iteration_bounds = array<i64: 1>, scalar_prefetch = 0 : i64, scratch_operands = 0 : i64, tpu.core_type = #tpu.core_type<tc>, window_params = [{transform_indices = @transform_0, window_bounds = array<i64: 32, 128>}, {pipeline_mode = #tpu.pipeline_mode<synchronous>, transform_indices = @transform_1, window_bounds = array<i64: 1, 128>}, {pipeline_mode = #tpu.pipeline_mode<synchronous>, transform_indices = @transform_2, window_bounds = array<i64: 1, 128>}, {transform_indices = @transform_3, window_bounds = array<i64: 32, 128>}]} {
    %c0 = arith.constant 0 : index
    %c0_0 = arith.constant 0 : index
    %0 = vector.load %arg1[%c0, %c0_0] : memref<32x128xf32, #tpu.memory_space<vmem>>, vector<32x128xf32>
    %c0_1 = arith.constant 0 : index
    %c0_2 = arith.constant 0 : index
    %1 = vector.load %arg2[%c0_1, %c0_2] : memref<1x128xf32, #tpu.memory_space<vmem>>, vector<1x128xf32>
    %2 = vector.broadcast %1 : vector<1x128xf32> to vector<32x128xf32>
    %3 = arith.mulf %0, %2 : vector<32x128xf32>
    %c0_3 = arith.constant 0 : index
    %c0_4 = arith.constant 0 : index
    %4 = vector.load %arg3[%c0_3, %c0_4] : memref<1x128xf32, #tpu.memory_space<vmem>>, vector<1x128xf32>
    %5 = vector.broadcast %4 : vector<1x128xf32> to vector<32x128xf32>
    %6 = arith.addf %3, %5 : vector<32x128xf32>
    %cst = arith.constant 0.000000e+00 : f32
    %7 = vector.broadcast %cst : f32 to vector<32x128xf32>
    %8 = arith.cmpf ogt, %6, %7 : vector<32x128xf32>
    %cst_5 = arith.constant 2.000000e-01 : f32
    %9 = vector.broadcast %cst_5 : f32 to vector<32x128xf32>
    %10 = arith.mulf %9, %6 : vector<32x128xf32>
    %11 = arith.select %8, %6, %10 : vector<32x128xi1>, vector<32x128xf32>
    %c0_6 = arith.constant 0 : index
    %c0_7 = arith.constant 0 : index
    %12 = vector.load %arg4[%c0_6, %c0_7] : memref<32x128xf32, #tpu.memory_space<vmem>>, vector<32x128xf32>
    tpu.vector_store %arg4[%c0_6, %c0_7], %11 {strides = array<i32>} : memref<32x128xf32, #tpu.memory_space<vmem>>, vector<32x128xf32>,
    return
  }
  func.func @transform_0(%arg0: i32) -> (i32, i32) {
    %c0_i32 = arith.constant 0 : i32
    %c0_i32_0 = arith.constant 0 : i32
    return %arg0, %c0_i32 : i32, i32
  }
  func.func @transform_1(%arg0: i32) -> (i32, i32) {
    %c0_i32 = arith.constant 0 : i32
    %c0_i32_0 = arith.constant 0 : i32
    %c0_i32_1 = arith.constant 0 : i32
    return %c0_i32, %c0_i32_0 : i32, i32
  }
  func.func @transform_2(%arg0: i32) -> (i32, i32) {
    %c0_i32 = arith.constant 0 : i32
    %c0_i32_0 = arith.constant 0 : i32
    %c0_i32_1 = arith.constant 0 : i32
    return %c0_i32, %c0_i32_0 : i32, i32
  }
  func.func @transform_3(%arg0: i32) -> (i32, i32) {
    %c0_i32 = arith.constant 0 : i32
    %c0_i32_0 = arith.constant 0 : i32
    return %arg0, %c0_i32 : i32, i32
  }
}

module attributes {stable_mosaic.version = 11 : i64} {
  func.func @_conv_stats_kernel(%arg0: i32, %arg1: memref<32x256xbf16, #tpu.memory_space<vmem>>, %arg2: memref<256x128xbf16, #tpu.memory_space<vmem>>, %arg3: memref<32x128xf32, #tpu.memory_space<vmem>>, %arg4: memref<1x8x128xf32, #tpu.memory_space<vmem>>) attributes {dimension_semantics = [#tpu.dimension_semantics<parallel>], iteration_bounds = array<i64: 1>, scalar_prefetch = 0 : i64, scratch_operands = 0 : i64, tpu.core_type = #tpu.core_type<tc>, window_params = [{transform_indices = @transform_0, window_bounds = array<i64: 32, 256>}, {pipeline_mode = #tpu.pipeline_mode<synchronous>, transform_indices = @transform_1, window_bounds = array<i64: 256, 128>}, {transform_indices = @transform_2, window_bounds = array<i64: 32, 128>}, {transform_indices = @transform_3, window_bounds = array<i64: 1, 8, 128>}]} {
    %c0 = arith.constant 0 : index
    %c0_0 = arith.constant 0 : index
    %0 = vector.load %arg1[%c0, %c0_0] : memref<32x256xbf16, #tpu.memory_space<vmem>>, vector<32x256xbf16>
    %c0_1 = arith.constant 0 : index
    %c0_2 = arith.constant 0 : index
    %1 = vector.load %arg2[%c0_1, %c0_2] : memref<256x128xbf16, #tpu.memory_space<vmem>>, vector<256x128xbf16>
    %cst = arith.constant dense<0.000000e+00> : vector<32x128xf32>
    %2 = tpu.matmul %0, %1, %cst {dimension_numbers = #tpu.dot_dimension_numbers<[1], [0], [0], [1], [0, 0, 1, 1], [], []>} : vector<32x256xbf16>, vector<256x128xbf16>, vector<32x128xf32> -> vector<32x128xf32>
    %c0_3 = arith.constant 0 : index
    %c0_4 = arith.constant 0 : index
    %3 = vector.load %arg3[%c0_3, %c0_4] : memref<32x128xf32, #tpu.memory_space<vmem>>, vector<32x128xf32>
    tpu.vector_store %arg3[%c0_3, %c0_4], %2 {strides = array<i32>} : memref<32x128xf32, #tpu.memory_space<vmem>>, vector<32x128xf32>,
    %cst_5 = arith.constant dense<0.000000e+00> : vector<128xf32>
    %4 = vector.multi_reduction <add>, %2, %cst_5 [0] : vector<32x128xf32> to vector<128xf32>
    %5 = vector.shape_cast %4 : vector<128xf32> to vector<1x128xf32>
    %6 = arith.mulf %2, %2 : vector<32x128xf32>
    %cst_6 = arith.constant dense<0.000000e+00> : vector<128xf32>
    %7 = vector.multi_reduction <add>, %6, %cst_6 [0] : vector<32x128xf32> to vector<128xf32>
    %8 = vector.shape_cast %7 : vector<128xf32> to vector<1x128xf32>
    %9 = tpu.iota {dimensions = array<i32: 0>} : vector<8x128xi32>
    %c0_i32 = arith.constant 0 : i32
    %10 = vector.broadcast %c0_i32 : i32 to vector<8x128xi32>
    %11 = arith.cmpi eq, %9, %10 : vector<8x128xi32>
    %c1_i32 = arith.constant 1 : i32
    %12 = vector.broadcast %c1_i32 : i32 to vector<8x128xi32>
    %13 = arith.cmpi eq, %9, %12 : vector<8x128xi32>
    %cst_7 = arith.constant 0.000000e+00 : f32
    %14 = vector.shape_cast %8 : vector<1x128xf32> to vector<1x128xf32>
    %15 = vector.broadcast %14 : vector<1x128xf32> to vector<8x128xf32>
    %16 = vector.broadcast %cst_7 : f32 to vector<8x128xf32>
    %17 = arith.select %13, %15, %16 : vector<8x128xi1>, vector<8x128xf32>
    %18 = vector.shape_cast %5 : vector<1x128xf32> to vector<1x128xf32>
    %19 = vector.broadcast %18 : vector<1x128xf32> to vector<8x128xf32>
    %20 = arith.select %11, %19, %17 : vector<8x128xi1>, vector<8x128xf32>
    %c0_8 = arith.constant 0 : index
    %c0_9 = arith.constant 0 : index
    %c0_10 = arith.constant 0 : index
    %21 = vector.load %arg4[%c0_8, %c0_9, %c0_10] : memref<1x8x128xf32, #tpu.memory_space<vmem>>, vector<1x8x128xf32>
    %22 = vector.shape_cast %21 : vector<1x8x128xf32> to vector<8x128xf32>
    %23 = vector.shape_cast %20 : vector<8x128xf32> to vector<1x8x128xf32>
    tpu.vector_store %arg4[%c0_8, %c0_9, %c0_10], %23 {strides = array<i32>} : memref<1x8x128xf32, #tpu.memory_space<vmem>>, vector<1x8x128xf32>,
    return
  }
  func.func @transform_0(%arg0: i32) -> (i32, i32) {
    %c0_i32 = arith.constant 0 : i32
    %c0_i32_0 = arith.constant 0 : i32
    return %arg0, %c0_i32 : i32, i32
  }
  func.func @transform_1(%arg0: i32) -> (i32, i32) {
    %c0_i32 = arith.constant 0 : i32
    %c0_i32_0 = arith.constant 0 : i32
    %c0_i32_1 = arith.constant 0 : i32
    return %c0_i32, %c0_i32_0 : i32, i32
  }
  func.func @transform_2(%arg0: i32) -> (i32, i32) {
    %c0_i32 = arith.constant 0 : i32
    %c0_i32_0 = arith.constant 0 : i32
    return %arg0, %c0_i32 : i32, i32
  }
  func.func @transform_3(%arg0: i32) -> (i32, i32, i32) {
    %c0_i32 = arith.constant 0 : i32
    %c0_i32_0 = arith.constant 0 : i32
    %c0_i32_1 = arith.constant 0 : i32
    return %arg0, %c0_i32, %c0_i32_0 : i32, i32, i32
  }
}

module attributes {stable_mosaic.version = 11 : i64} {
  func.func @_conv_stats_kernel(%arg0: i32, %arg1: memref<8x512xbf16, #tpu.memory_space<vmem>>, %arg2: memref<512x128xbf16, #tpu.memory_space<vmem>>, %arg3: memref<8x128xf32, #tpu.memory_space<vmem>>, %arg4: memref<1x8x128xf32, #tpu.memory_space<vmem>>) attributes {dimension_semantics = [#tpu.dimension_semantics<parallel>], iteration_bounds = array<i64: 1>, scalar_prefetch = 0 : i64, scratch_operands = 0 : i64, tpu.core_type = #tpu.core_type<tc>, window_params = [{transform_indices = @transform_0, window_bounds = array<i64: 8, 512>}, {pipeline_mode = #tpu.pipeline_mode<synchronous>, transform_indices = @transform_1, window_bounds = array<i64: 512, 128>}, {transform_indices = @transform_2, window_bounds = array<i64: 8, 128>}, {transform_indices = @transform_3, window_bounds = array<i64: 1, 8, 128>}]} {
    %c0 = arith.constant 0 : index
    %c0_0 = arith.constant 0 : index
    %0 = vector.load %arg1[%c0, %c0_0] : memref<8x512xbf16, #tpu.memory_space<vmem>>, vector<8x512xbf16>
    %c0_1 = arith.constant 0 : index
    %c0_2 = arith.constant 0 : index
    %1 = vector.load %arg2[%c0_1, %c0_2] : memref<512x128xbf16, #tpu.memory_space<vmem>>, vector<512x128xbf16>
    %cst = arith.constant dense<0.000000e+00> : vector<8x128xf32>
    %2 = tpu.matmul %0, %1, %cst {dimension_numbers = #tpu.dot_dimension_numbers<[1], [0], [0], [1], [0, 0, 1, 1], [], []>} : vector<8x512xbf16>, vector<512x128xbf16>, vector<8x128xf32> -> vector<8x128xf32>
    %c0_3 = arith.constant 0 : index
    %c0_4 = arith.constant 0 : index
    %3 = vector.load %arg3[%c0_3, %c0_4] : memref<8x128xf32, #tpu.memory_space<vmem>>, vector<8x128xf32>
    tpu.vector_store %arg3[%c0_3, %c0_4], %2 {strides = array<i32>} : memref<8x128xf32, #tpu.memory_space<vmem>>, vector<8x128xf32>,
    %cst_5 = arith.constant dense<0.000000e+00> : vector<128xf32>
    %4 = vector.multi_reduction <add>, %2, %cst_5 [0] : vector<8x128xf32> to vector<128xf32>
    %5 = vector.shape_cast %4 : vector<128xf32> to vector<1x128xf32>
    %6 = arith.mulf %2, %2 : vector<8x128xf32>
    %cst_6 = arith.constant dense<0.000000e+00> : vector<128xf32>
    %7 = vector.multi_reduction <add>, %6, %cst_6 [0] : vector<8x128xf32> to vector<128xf32>
    %8 = vector.shape_cast %7 : vector<128xf32> to vector<1x128xf32>
    %9 = tpu.iota {dimensions = array<i32: 0>} : vector<8x128xi32>
    %c0_i32 = arith.constant 0 : i32
    %10 = vector.broadcast %c0_i32 : i32 to vector<8x128xi32>
    %11 = arith.cmpi eq, %9, %10 : vector<8x128xi32>
    %c1_i32 = arith.constant 1 : i32
    %12 = vector.broadcast %c1_i32 : i32 to vector<8x128xi32>
    %13 = arith.cmpi eq, %9, %12 : vector<8x128xi32>
    %cst_7 = arith.constant 0.000000e+00 : f32
    %14 = vector.shape_cast %8 : vector<1x128xf32> to vector<1x128xf32>
    %15 = vector.broadcast %14 : vector<1x128xf32> to vector<8x128xf32>
    %16 = vector.broadcast %cst_7 : f32 to vector<8x128xf32>
    %17 = arith.select %13, %15, %16 : vector<8x128xi1>, vector<8x128xf32>
    %18 = vector.shape_cast %5 : vector<1x128xf32> to vector<1x128xf32>
    %19 = vector.broadcast %18 : vector<1x128xf32> to vector<8x128xf32>
    %20 = arith.select %11, %19, %17 : vector<8x128xi1>, vector<8x128xf32>
    %c0_8 = arith.constant 0 : index
    %c0_9 = arith.constant 0 : index
    %c0_10 = arith.constant 0 : index
    %21 = vector.load %arg4[%c0_8, %c0_9, %c0_10] : memref<1x8x128xf32, #tpu.memory_space<vmem>>, vector<1x8x128xf32>
    %22 = vector.shape_cast %21 : vector<1x8x128xf32> to vector<8x128xf32>
    %23 = vector.shape_cast %20 : vector<8x128xf32> to vector<1x8x128xf32>
    tpu.vector_store %arg4[%c0_8, %c0_9, %c0_10], %23 {strides = array<i32>} : memref<1x8x128xf32, #tpu.memory_space<vmem>>, vector<1x8x128xf32>,
    return
  }
  func.func @transform_0(%arg0: i32) -> (i32, i32) {
    %c0_i32 = arith.constant 0 : i32
    %c0_i32_0 = arith.constant 0 : i32
    return %arg0, %c0_i32 : i32, i32
  }
  func.func @transform_1(%arg0: i32) -> (i32, i32) {
    %c0_i32 = arith.constant 0 : i32
    %c0_i32_0 = arith.constant 0 : i32
    %c0_i32_1 = arith.constant 0 : i32
    return %c0_i32, %c0_i32_0 : i32, i32
  }
  func.func @transform_2(%arg0: i32) -> (i32, i32) {
    %c0_i32 = arith.constant 0 : i32
    %c0_i32_0 = arith.constant 0 : i32
    return %arg0, %c0_i32 : i32, i32
  }
  func.func @transform_3(%arg0: i32) -> (i32, i32, i32) {
    %c0_i32 = arith.constant 0 : i32
    %c0_i32_0 = arith.constant 0 : i32
    %c0_i32_1 = arith.constant 0 : i32
    return %arg0, %c0_i32, %c0_i32_0 : i32, i32, i32
  }
}

module attributes {stable_mosaic.version = 11 : i64} {
  func.func @_affine_lrelu_kernel(%arg0: i32, %arg1: memref<8x128xf32, #tpu.memory_space<vmem>>, %arg2: memref<1x128xf32, #tpu.memory_space<vmem>>, %arg3: memref<1x128xf32, #tpu.memory_space<vmem>>, %arg4: memref<8x128xf32, #tpu.memory_space<vmem>>) attributes {dimension_semantics = [#tpu.dimension_semantics<parallel>], iteration_bounds = array<i64: 1>, scalar_prefetch = 0 : i64, scratch_operands = 0 : i64, tpu.core_type = #tpu.core_type<tc>, window_params = [{transform_indices = @transform_0, window_bounds = array<i64: 8, 128>}, {pipeline_mode = #tpu.pipeline_mode<synchronous>, transform_indices = @transform_1, window_bounds = array<i64: 1, 128>}, {pipeline_mode = #tpu.pipeline_mode<synchronous>, transform_indices = @transform_2, window_bounds = array<i64: 1, 128>}, {transform_indices = @transform_3, window_bounds = array<i64: 8, 128>}]} {
    %c0 = arith.constant 0 : index
    %c0_0 = arith.constant 0 : index
    %0 = vector.load %arg1[%c0, %c0_0] : memref<8x128xf32, #tpu.memory_space<vmem>>, vector<8x128xf32>
    %c0_1 = arith.constant 0 : index
    %c0_2 = arith.constant 0 : index
    %1 = vector.load %arg2[%c0_1, %c0_2] : memref<1x128xf32, #tpu.memory_space<vmem>>, vector<1x128xf32>
    %2 = vector.broadcast %1 : vector<1x128xf32> to vector<8x128xf32>
    %3 = arith.mulf %0, %2 : vector<8x128xf32>
    %c0_3 = arith.constant 0 : index
    %c0_4 = arith.constant 0 : index
    %4 = vector.load %arg3[%c0_3, %c0_4] : memref<1x128xf32, #tpu.memory_space<vmem>>, vector<1x128xf32>
    %5 = vector.broadcast %4 : vector<1x128xf32> to vector<8x128xf32>
    %6 = arith.addf %3, %5 : vector<8x128xf32>
    %cst = arith.constant 0.000000e+00 : f32
    %7 = vector.broadcast %cst : f32 to vector<8x128xf32>
    %8 = arith.cmpf ogt, %6, %7 : vector<8x128xf32>
    %cst_5 = arith.constant 2.000000e-01 : f32
    %9 = vector.broadcast %cst_5 : f32 to vector<8x128xf32>
    %10 = arith.mulf %9, %6 : vector<8x128xf32>
    %11 = arith.select %8, %6, %10 : vector<8x128xi1>, vector<8x128xf32>
    %c0_6 = arith.constant 0 : index
    %c0_7 = arith.constant 0 : index
    %12 = vector.load %arg4[%c0_6, %c0_7] : memref<8x128xf32, #tpu.memory_space<vmem>>, vector<8x128xf32>
    tpu.vector_store %arg4[%c0_6, %c0_7], %11 {strides = array<i32>} : memref<8x128xf32, #tpu.memory_space<vmem>>, vector<8x128xf32>,
    return
  }
  func.func @transform_0(%arg0: i32) -> (i32, i32) {
    %c0_i32 = arith.constant 0 : i32
    %c0_i32_0 = arith.constant 0 : i32
    return %arg0, %c0_i32 : i32, i32
  }
  func.func @transform_1(%arg0: i32) -> (i32, i32) {
    %c0_i32 = arith.constant 0 : i32
    %c0_i32_0 = arith.constant 0 : i32
    %c0_i32_1 = arith.constant 0 : i32
    return %c0_i32, %c0_i32_0 : i32, i32
  }
  func.func @transform_2(%arg0: i32) -> (i32, i32) {
    %c0_i32 = arith.constant 0 : i32
    %c0_i32_0 = arith.constant 0 : i32
    %c0_i32_1 = arith.constant 0 : i32
    return %c0_i32, %c0_i32_0 : i32, i32
  }
  func.func @transform_3(%arg0: i32) -> (i32, i32) {
    %c0_i32 = arith.constant 0 : i32
    %c0_i32_0 = arith.constant 0 : i32
    return %arg0, %c0_i32 : i32, i32
  }
}

</mosaic_0001>

<llo_original>
// kernel: net_ud_forward.5
$region0: #{net_ud_forward.5}
  #allocation0 [shape = 'u32[]', space=smem, size = 0x4, offset = 0x4, fixed_abs, tag = 'smem constant byte address 0x4 - core index']
  #allocation1 [shape = 'u32[144,128]{1,0:T(1,128)}', space=vmem, size = 0x12000, scoped, tag = 'internal scratch']
  %s0 = inlined_call_operand.vmem [shape: bf16[128,128], index: 0, kind: input, shape index: {}]
  %s1 = inlined_call_operand.vmem [shape: bf16[128,128], index: 1, kind: input, shape index: {}]
  %s2 = inlined_call_operand.vmem [shape: f32[128,128], index: 2, kind: output, shape index: {}]
  %s3 = sld [smem:[#allocation0]]
  $region18: #{net_ud_forward.5} parent=0
    _
  %s5 = ssub.s32 1, %s3
  %s6 = scalar_select 0, %s5, %s3
  // Predicated region
  $region2: #{net_ud_forward.5} parent=0 // pred_check
    _
  $region3: #{net_ud_forward.5} parent=0 // pred_check_branch
    %8 = sbr.rel (0) target = $region5
  $region4: #{net_ud_forward.5} parent=0 // pred_region
    _
  $region5: #{net_ud_forward.5} parent=0 // pred_fallthru
    _
  // Predicated region
  $region6: #{net_ud_forward.5} parent=0 // pred_check
    _
  $region7: #{net_ud_forward.5} parent=0 // pred_check_branch
    %10 = sbr.rel (0) target = $region9
  $region8: #{net_ud_forward.5} parent=0 // pred_region
    _
  $region9: #{net_ud_forward.5} parent=0 // pred_fallthru
    _
  %v12 = vld [vmem:[%s0] sm:$0xf]
  %v13 = vld [vmem:[%s0 + $0x4] sm:$0xf]
  %v14 = vld [vmem:[%s0 + $0x8] sm:$0xf]
  %v15 = vld [vmem:[%s0 + $0xc] sm:$0xf]
  %v16 = vld [vmem:[%s0 + $0x10] sm:$0xf]
  %v17 = vld [vmem:[%s0 + $0x14] sm:$0xf]
  %v18 = vld [vmem:[%s0 + $0x18] sm:$0xf]
  %v19 = vld [vmem:[%s0 + $0x1c] sm:$0xf]
  %v20 = vld [vmem:[%s0 + $0x20] sm:$0xf]
  %v21 = vld [vmem:[%s0 + $0x24] sm:$0xf]
  %v22 = vld [vmem:[%s0 + $0x28] sm:$0xf]
  %v23 = vld [vmem:[%s0 + $0x2c] sm:$0xf]
  %v24 = vld [vmem:[%s0 + $0x30] sm:$0xf]
  %v25 = vld [vmem:[%s0 + $0x34] sm:$0xf]
  %v26 = vld [vmem:[%s0 + $0x38] sm:$0xf]
  %v27 = vld [vmem:[%s0 + $0x3c] sm:$0xf]
  %v28 = vld [vmem:[%s1] sm:$0xf]
  %v29 = vld [vmem:[%s1 + $0x4] sm:$0xf]
  %v30 = vld [vmem:[%s1 + $0x8] sm:$0xf]
  %v31 = vld [vmem:[%s1 + $0xc] sm:$0xf]
  %v32 = vld [vmem:[%s1 + $0x10] sm:$0xf]
  %v33 = vld [vmem:[%s1 + $0x14] sm:$0xf]
  %v34 = vld [vmem:[%s1 + $0x18] sm:$0xf]
  %v35 = vld [vmem:[%s1 + $0x1c] sm:$0xf]
  %v36 = vld [vmem:[%s1 + $0x20] sm:$0xf]
  %v37 = vld [vmem:[%s1 + $0x24] sm:$0xf]
  %v38 = vld [vmem:[%s1 + $0x28] sm:$0xf]
  %v39 = vld [vmem:[%s1 + $0x2c] sm:$0xf]
  %v40 = vld [vmem:[%s1 + $0x30] sm:$0xf]
  %v41 = vld [vmem:[%s1 + $0x34] sm:$0xf]
  %v42 = vld [vmem:[%s1 + $0x38] sm:$0xf]
  %v43 = vld [vmem:[%s1 + $0x3c] sm:$0xf]
  %v60 = vunpack.c.l.b16 %v12
  %v61 = vunpack.c.l.b16 %v13
  %v62 = vunpack.c.l.b16 %v14
  %v63 = vunpack.c.l.b16 %v15
  %v64 = vunpack.c.l.b16 %v16
  %v65 = vunpack.c.l.b16 %v17
  %v66 = vunpack.c.l.b16 %v18
  %v67 = vunpack.c.l.b16 %v19
  %v68 = vunpack.c.l.b16 %v20
  %v69 = vunpack.c.l.b16 %v21
  %v70 = vunpack.c.l.b16 %v22
  %v71 = vunpack.c.l.b16 %v23
  %v72 = vunpack.c.l.b16 %v24
  %v73 = vunpack.c.l.b16 %v25
  %v74 = vunpack.c.l.b16 %v26
  %v75 = vunpack.c.l.b16 %v27
  %v76 = vpack.c.b16 %v61, %v60
  %v77 = vpack.c.b16 %v63, %v62
  %v78 = vpack.c.b16 %v65, %v64
  %v79 = vpack.c.b16 %v67, %v66
  %v80 = vpack.c.b16 %v69, %v68
  %v81 = vpack.c.b16 %v71, %v70
  %v82 = vpack.c.b16 %v73, %v72
  %v83 = vpack.c.b16 %v75, %v74
  %v108 = vunpack.c.l.b16 %v28
  %v109 = vunpack.c.l.b16 %v29
  %v110 = vunpack.c.l.b16 %v30
  %v111 = vunpack.c.l.b16 %v31
  %v112 = vunpack.c.l.b16 %v32
  %v113 = vunpack.c.l.b16 %v33
  %v114 = vunpack.c.l.b16 %v34
  %v115 = vunpack.c.l.b16 %v35
  %v116 = vunpack.c.l.b16 %v36
  %v117 = vunpack.c.l.b16 %v37
  %v118 = vunpack.c.l.b16 %v38
  %v119 = vunpack.c.l.b16 %v39
  %v120 = vunpack.c.l.b16 %v40
  %v121 = vunpack.c.l.b16 %v41
  %v122 = vunpack.c.l.b16 %v42
  %v123 = vunpack.c.l.b16 %v43
  %v124 = vpack.c.b16 %v109, %v108
  %v125 = vpack.c.b16 %v111, %v110
  %v126 = vpack.c.b16 %v113, %v112
  %v127 = vpack.c.b16 %v115, %v114
  %v128 = vpack.c.b16 %v117, %v116
  %v129 = vpack.c.b16 %v119, %v118
  %v130 = vpack.c.b16 %v121, %v120
  %v131 = vpack.c.b16 %v123, %v122
  %140 = vmatprep.subr.bf16.mxu0 0
  %141 = vmatpush1.bf16.msra.mxu0 %v124
  %142 = vmatprep.subr.bf16.mxu0 0
  %143 = vmatpush1.bf16.msra.mxu0 %v125
  %144 = vmatprep.subr.bf16.mxu0 0
  %145 = vmatpush1.bf16.msra.mxu0 %v126
  %146 = vmatprep.subr.bf16.mxu0 0
  %147 = vmatpush1.bf16.msra.mxu0 %v127
  %148 = vmatprep.subr.bf16.mxu0 0
  %149 = vmatpush1.bf16.msra.mxu0 %v128
  %150 = vmatprep.subr.bf16.mxu0 0
  %151 = vmatpush1.bf16.msra.mxu0 %v129
  %152 = vmatprep.subr.bf16.mxu0 0
  %153 = vmatpush1.bf16.msra.mxu0 %v130
  %154 = vmatprep.subr.bf16.mxu0 0
  %155 = vmatpush1.bf16.msra.mxu0 %v131
  %156 = vmatprep.subr.bf16.mxu0 0
  %157 = vmatpush1.bf16.msra.mxu0 0
  %158 = vmatprep.subr.bf16.mxu0 0
  %159 = vmatpush1.bf16.msra.mxu0 0
  %160 = vmatprep.subr.bf16.mxu0 0
  %161 = vmatpush1.bf16.msra.mxu0 0
  %162 = vmatprep.subr.bf16.mxu0 0
  %163 = vmatpush1.bf16.msra.mxu0 0
  %164 = vmatprep.subr.bf16.mxu0 0
  %165 = vmatpush1.bf16.msra.mxu0 0
  %166 = vmatprep.subr.bf16.mxu0 0
  %167 = vmatpush1.bf16.msra.mxu0 0
  %168 = vmatprep.subr.bf16.mxu0 0
  %169 = vmatpush1.bf16.msra.mxu0 0
  %170 = vmatprep.subr.bf16.mxu0 0
  %171 = vmatpush1.bf16.msra.mxu0 0
  %172 = vmatprep.mubr.bf16.mxu0 0
  %173 = vmatmul.mubr.bf16.gmra.mrb[0].mxu0 %v76
  %v174 = vpop.f32.mrb[0].mxu0
  %v175 = vadd.f32 0.0, %v174
  %v176 = vpop.f32.mrb[0].mxu0
  %v177 = vpop.f32.mrb[0].mxu0
  %v178 = vadd.f32 0.0, %v177
  %v179 = vpop.f32.mrb[0].mxu0
  %180 = vmatprep.mubr.bf16.mxu0 0
  %181 = vmatmul.mubr.bf16.gmra.mrb[0].mxu0 %v77
  %v182 = vpop.f32.mrb[0].mxu0
  %v183 = vadd.f32 0.0, %v182
  %v184 = vpop.f32.mrb[0].mxu0
  %v185 = vpop.f32.mrb[0].mxu0
  %v186 = vadd.f32 0.0, %v185
  %v187 = vpop.f32.mrb[0].mxu0
  %188 = vmatprep.mubr.bf16.mxu0 0
  %189 = vmatmul.mubr.bf16.gmra.mrb[0].mxu0 %v78
  %v190 = vpop.f32.mrb[0].mxu0
  %v191 = vadd.f32 0.0, %v190
  %v192 = vpop.f32.mrb[0].mxu0
  %v193 = vpop.f32.mrb[0].mxu0
  %v194 = vadd.f32 0.0, %v193
  %v195 = vpop.f32.mrb[0].mxu0
  %196 = vmatprep.mubr.bf16.mxu0 0
  %197 = vmatmul.mubr.bf16.gmra.mrb[0].mxu0 %v79
  %v198 = vpop.f32.mrb[0].mxu0
  %v199 = vadd.f32 0.0, %v198
  %v200 = vpop.f32.mrb[0].mxu0
  %v201 = vpop.f32.mrb[0].mxu0
  %v202 = vadd.f32 0.0, %v201
  %v203 = vpop.f32.mrb[0].mxu0
  %204 = vmatprep.mubr.bf16.mxu0 0
  %205 = vmatmul.mubr.bf16.gmra.mrb[0].mxu0 %v80
  %v206 = vpop.f32.mrb[0].mxu0
  %v207 = vadd.f32 0.0, %v206
  %v208 = vpop.f32.mrb[0].mxu0
  %v209 = vpop.f32.mrb[0].mxu0
  %v210 = vadd.f32 0.0, %v209
  %v211 = vpop.f32.mrb[0].mxu0
  %212 = vmatprep.mubr.bf16.mxu0 0
  %213 = vmatmul.mubr.bf16.gmra.mrb[0].mxu0 %v81
  %v214 = vpop.f32.mrb[0].mxu0
  %v215 = vadd.f32 0.0, %v214
  %v216 = vpop.f32.mrb[0].mxu0
  %v217 = vpop.f32.mrb[0].mxu0
  %v218 = vadd.f32 0.0, %v217
  %v219 = vpop.f32.mrb[0].mxu0
  %220 = vmatprep.mubr.bf16.mxu0 0
  %221 = vmatmul.mubr.bf16.gmra.mrb[0].mxu0 %v82
  %v222 = vpop.f32.mrb[0].mxu0
  %v223 = vadd.f32 0.0, %v222
  %v224 = vpop.f32.mrb[0].mxu0
  %v225 = vpop.f32.mrb[0].mxu0
  %v226 = vadd.f32 0.0, %v225
  %v227 = vpop.f32.mrb[0].mxu0
  %228 = vmatprep.mubr.bf16.mxu0 0
  %229 = vmatmul.mubr.bf16.gmra.mrb[0].mxu0 %v83
  %v230 = vpop.f32.mrb[0].mxu0
  %v231 = vadd.f32 0.0, %v230
  %v232 = vpop.f32.mrb[0].mxu0
  %v233 = vpop.f32.mrb[0].mxu0
  %v234 = vadd.f32 0.0, %v233
  %v235 = vpop.f32.mrb[0].mxu0
  %236 = vdwg.mxu0
  %vm237 = vcmp.gt.f32.partialorder %v175, 0.0
  %vm238 = vcmp.gt.f32.partialorder %v178, 0.0
  %vm239 = vcmp.gt.f32.partialorder %v183, 0.0
  %vm240 = vcmp.gt.f32.partialorder %v186, 0.0
  %vm241 = vcmp.gt.f32.partialorder %v191, 0.0
  %vm242 = vcmp.gt.f32.partialorder %v194, 0.0
  %vm243 = vcmp.gt.f32.partialorder %v199, 0.0
  %vm244 = vcmp.gt.f32.partialorder %v202, 0.0
  %vm245 = vcmp.gt.f32.partialorder %v207, 0.0
  %vm246 = vcmp.gt.f32.partialorder %v210, 0.0
  %vm247 = vcmp.gt.f32.partialorder %v215, 0.0
  %vm248 = vcmp.gt.f32.partialorder %v218, 0.0
  %vm249 = vcmp.gt.f32.partialorder %v223, 0.0
  %vm250 = vcmp.gt.f32.partialorder %v226, 0.0
  %vm251 = vcmp.gt.f32.partialorder %v231, 0.0
  %vm252 = vcmp.gt.f32.partialorder %v234, 0.0
  %v253 = vmul.f32 %v175, 0.2
  %v254 = vmul.f32 %v178, 0.2
  %v255 = vmul.f32 %v183, 0.2
  %v256 = vmul.f32 %v186, 0.2
  %v257 = vmul.f32 %v191, 0.2
  %v258 = vmul.f32 %v194, 0.2
  %v259 = vmul.f32 %v199, 0.2
  %v260 = vmul.f32 %v202, 0.2
  %v261 = vmul.f32 %v207, 0.2
  %v262 = vmul.f32 %v210, 0.2
  %v263 = vmul.f32 %v215, 0.2
  %v264 = vmul.f32 %v218, 0.2
  %v265 = vmul.f32 %v223, 0.2
  %v266 = vmul.f32 %v226, 0.2
  %v267 = vmul.f32 %v231, 0.2
  %v268 = vmul.f32 %v234, 0.2
  %v269 = vsel %vm237, %v175, %v253
  %v270 = vsel %vm238, %v178, %v254
  %v271 = vsel %vm239, %v183, %v255
  %v272 = vsel %vm240, %v186, %v256
  %v273 = vsel %vm241, %v191, %v257
  %v274 = vsel %vm242, %v194, %v258
  %v275 = vsel %vm243, %v199, %v259
  %v276 = vsel %vm244, %v202, %v260
  %v277 = vsel %vm245, %v207, %v261
  %v278 = vsel %vm246, %v210, %v262
  %v279 = vsel %vm247, %v215, %v263
  %v280 = vsel %vm248, %v218, %v264
  %v281 = vsel %vm249, %v223, %v265
  %v282 = vsel %vm250, %v226, %v266
  %v283 = vsel %vm251, %v231, %v267
  %v284 = vsel %vm252, %v234, %v268
  %285 = vst [vmem:[%s2] sm:$0xff] %v269
  %286 = vst [vmem:[%s2 + $0x8] sm:$0xff] %v270
  %287 = vst [vmem:[%s2 + $0x10] sm:$0xff] %v271
  %288 = vst [vmem:[%s2 + $0x18] sm:$0xff] %v272
  %289 = vst [vmem:[%s2 + $0x20] sm:$0xff] %v273
  %290 = vst [vmem:[%s2 + $0x28] sm:$0xff] %v274
  %291 = vst [vmem:[%s2 + $0x30] sm:$0xff] %v275
  %292 = vst [vmem:[%s2 + $0x38] sm:$0xff] %v276
  %293 = vst [vmem:[%s2 + $0x40] sm:$0xff] %v277
  %294 = vst [vmem:[%s2 + $0x48] sm:$0xff] %v278
  %295 = vst [vmem:[%s2 + $0x50] sm:$0xff] %v279
  %296 = vst [vmem:[%s2 + $0x58] sm:$0xff] %v280
  %297 = vst [vmem:[%s2 + $0x60] sm:$0xff] %v281
  %298 = vst [vmem:[%s2 + $0x68] sm:$0xff] %v282
  %299 = vst [vmem:[%s2 + $0x70] sm:$0xff] %v283
  %300 = vst [vmem:[%s2 + $0x78] sm:$0xff] %v284
  // Predicated region
  $region10: #{net_ud_forward.5} parent=0 // pred_check
    _
  $region11: #{net_ud_forward.5} parent=0 // pred_check_branch
    %302 = sbr.rel (0) target = $region13
  $region12: #{net_ud_forward.5} parent=0 // pred_region
    _
  $region13: #{net_ud_forward.5} parent=0 // pred_fallthru
    _
  // Predicated region
  $region14: #{net_ud_forward.5} parent=0 // pred_check
    _
  $region15: #{net_ud_forward.5} parent=0 // pred_check_branch
    %304 = sbr.rel (0) target = $region17
  $region16: #{net_ud_forward.5} parent=0 // pred_region
    _
  $region17: #{net_ud_forward.5} parent=0 // pred_fallthru
    _

// kernel: net_ud_forward.7
$region0: #{net_ud_forward.7}
  #allocation0 [shape = 'u32[]', space=smem, size = 0x4, offset = 0x4, fixed_abs, tag = 'smem constant byte address 0x4 - core index']
  #allocation1 [shape = 'u32[144,128]{1,0:T(1,128)}', space=vmem, size = 0x12000, scoped, tag = 'internal scratch']
  %s0 = inlined_call_operand.vmem [shape: f32[32,128], index: 0, kind: input, shape index: {}]
  %s1 = inlined_call_operand.vmem [shape: f32[1,128], index: 1, kind: input, shape index: {}]
  %s2 = inlined_call_operand.vmem [shape: f32[1,128], index: 2, kind: input, shape index: {}]
  %s3 = inlined_call_operand.vmem [shape: f32[32,128], index: 3, kind: output, shape index: {}]
  %s4 = sld [smem:[#allocation0]]
  $region22: #{net_ud_forward.7} parent=0
    _
  %s6 = ssub.s32 1, %s4
  %s7 = scalar_select 0, %s6, %s4
  // Predicated region
  $region2: #{net_ud_forward.7} parent=0 // pred_check
    _
  $region3: #{net_ud_forward.7} parent=0 // pred_check_branch
    %9 = sbr.rel (0) target = $region5
  $region4: #{net_ud_forward.7} parent=0 // pred_region
    _
  $region5: #{net_ud_forward.7} parent=0 // pred_fallthru
    _
  // Predicated region
  $region6: #{net_ud_forward.7} parent=0 // pred_check
    _
  $region7: #{net_ud_forward.7} parent=0 // pred_check_branch
    %11 = sbr.rel (0) target = $region9
  $region8: #{net_ud_forward.7} parent=0 // pred_region
    _
  $region9: #{net_ud_forward.7} parent=0 // pred_fallthru
    _
  // Predicated region
  $region10: #{net_ud_forward.7} parent=0 // pred_check
    _
  $region11: #{net_ud_forward.7} parent=0 // pred_check_branch
    %13 = sbr.rel (0) target = $region13
  $region12: #{net_ud_forward.7} parent=0 // pred_region
    _
  $region13: #{net_ud_forward.7} parent=0 // pred_fallthru
    _
  %v14 = vld [vmem:[%s0] sm:$0xff]
  %v15 = vld [vmem:[%s0 + $0x8] sm:$0xff]
  %v16 = vld [vmem:[%s0 + $0x10] sm:$0xff]
  %v17 = vld [vmem:[%s0 + $0x18] sm:$0xff]
  %v18 = vld [vmem:[%s1] sm:$0x1]
  %v20 = vlaneseq
  %v21 = vshrl.u32 %v20, 7
  %v22 = vsub.s32 0, %v21
  %v23 = vrot.slane %v18, %v22
  %v25 = vmul.f32 %v14, %v23
  %v26 = vmul.f32 %v15, %v23
  %v27 = vmul.f32 %v16, %v23
  %v28 = vmul.f32 %v17, %v23
  %v29 = vld [vmem:[%s2] sm:$0x1]
  %v31 = vlaneseq
  %v32 = vshrl.u32 %v31, 7
  %v33 = vsub.s32 0, %v32
  %v34 = vrot.slane %v29, %v33
  %v36 = vadd.f32 %v25, %v34
  %v37 = vadd.f32 %v26, %v34
  %v38 = vadd.f32 %v27, %v34
  %v39 = vadd.f32 %v28, %v34
  %vm40 = vcmp.gt.f32.partialorder %v36, 0.0
  %vm41 = vcmp.gt.f32.partialorder %v37, 0.0
  %vm42 = vcmp.gt.f32.partialorder %v38, 0.0
  %vm43 = vcmp.gt.f32.partialorder %v39, 0.0
  %v44 = vmul.f32 %v36, 0.2
  %v45 = vmul.f32 %v37, 0.2
  %v46 = vmul.f32 %v38, 0.2
  %v47 = vmul.f32 %v39, 0.2
  %v48 = vsel %vm40, %v36, %v44
  %v49 = vsel %vm41, %v37, %v45
  %v50 = vsel %vm42, %v38, %v46
  %v51 = vsel %vm43, %v39, %v47
  %52 = vst [vmem:[%s3] sm:$0xff] %v48
  %53 = vst [vmem:[%s3 + $0x8] sm:$0xff] %v49
  %54 = vst [vmem:[%s3 + $0x10] sm:$0xff] %v50
  %55 = vst [vmem:[%s3 + $0x18] sm:$0xff] %v51
  // Predicated region
  $region14: #{net_ud_forward.7} parent=0 // pred_check
    _
  $region15: #{net_ud_forward.7} parent=0 // pred_check_branch
    %57 = sbr.rel (0) target = $region17
  $region16: #{net_ud_forward.7} parent=0 // pred_region
    _
  $region17: #{net_ud_forward.7} parent=0 // pred_fallthru
    _
  // Predicated region
  $region18: #{net_ud_forward.7} parent=0 // pred_check
    _
  $region19: #{net_ud_forward.7} parent=0 // pred_check_branch
    %59 = sbr.rel (0) target = $region21
  $region20: #{net_ud_forward.7} parent=0 // pred_region
    _
  $region21: #{net_ud_forward.7} parent=0 // pred_fallthru
    _

// kernel: net_ud_forward.6
$region0: #{net_ud_forward.6}
  #allocation0 [shape = 'u32[]', space=smem, size = 0x4, offset = 0x4, fixed_abs, tag = 'smem constant byte address 0x4 - core index']
  #allocation1 [shape = 'u32[144,128]{1,0:T(1,128)}', space=vmem, size = 0x12000, scoped, tag = 'internal scratch']
  %s0 = inlined_call_operand.vmem [shape: bf16[32,256], index: 0, kind: input, shape index: {}]
  %s1 = inlined_call_operand.vmem [shape: bf16[256,128], index: 1, kind: input, shape index: {}]
  %s2 = inlined_call_operand.vmem [shape: f32[32,128], index: 2, kind: output, shape index: {0}]
  %s3 = inlined_call_operand.vmem [shape: f32[1,8,128], index: 3, kind: output, shape index: {1}]
  %4 = xla_tuple %s2, %s3
  %s5 = sld [smem:[#allocation0]]
  $region26: #{net_ud_forward.6} parent=0
    _
  %s7 = ssub.s32 1, %s5
  %s8 = scalar_select 0, %s7, %s5
  // Predicated region
  $region2: #{net_ud_forward.6} parent=0 // pred_check
    _
  $region3: #{net_ud_forward.6} parent=0 // pred_check_branch
    %10 = sbr.rel (0) target = $region5
  $region4: #{net_ud_forward.6} parent=0 // pred_region
    _
  $region5: #{net_ud_forward.6} parent=0 // pred_fallthru
    _
  // Predicated region
  $region6: #{net_ud_forward.6} parent=0 // pred_check
    _
  $region7: #{net_ud_forward.6} parent=0 // pred_check_branch
    %12 = sbr.rel (0) target = $region9
  $region8: #{net_ud_forward.6} parent=0 // pred_region
    _
  $region9: #{net_ud_forward.6} parent=0 // pred_fallthru
    _
  %v14 = vld [vmem:[%s0] sm:$0xff]
  %v15 = vld [vmem:[%s0 + $0x8] sm:$0xff]
  %v16 = vld [vmem:[%s0 + $0x10] sm:$0xff]
  %v17 = vld [vmem:[%s0 + $0x18] sm:$0xff]
  %v18 = vld [vmem:[%s1] sm:$0xf]
  %v19 = vld [vmem:[%s1 + $0x4] sm:$0xf]
  %v20 = vld [vmem:[%s1 + $0x8] sm:$0xf]
  %v21 = vld [vmem:[%s1 + $0xc] sm:$0xf]
  %v22 = vld [vmem:[%s1 + $0x10] sm:$0xf]
  %v23 = vld [vmem:[%s1 + $0x14] sm:$0xf]
  %v24 = vld [vmem:[%s1 + $0x18] sm:$0xf]
  %v25 = vld [vmem:[%s1 + $0x1c] sm:$0xf]
  %v26 = vld [vmem:[%s1 + $0x20] sm:$0xf]
  %v27 = vld [vmem:[%s1 + $0x24] sm:$0xf]
  %v28 = vld [vmem:[%s1 + $0x28] sm:$0xf]
  %v29 = vld [vmem:[%s1 + $0x2c] sm:$0xf]
  %v30 = vld [vmem:[%s1 + $0x30] sm:$0xf]
  %v31 = vld [vmem:[%s1 + $0x34] sm:$0xf]
  %v32 = vld [vmem:[%s1 + $0x38] sm:$0xf]
  %v33 = vld [vmem:[%s1 + $0x3c] sm:$0xf]
  %v34 = vld [vmem:[%s1 + $0x40] sm:$0xf]
  %v35 = vld [vmem:[%s1 + $0x44] sm:$0xf]
  %v36 = vld [vmem:[%s1 + $0x48] sm:$0xf]
  %v37 = vld [vmem:[%s1 + $0x4c] sm:$0xf]
  %v38 = vld [vmem:[%s1 + $0x50] sm:$0xf]
  %v39 = vld [vmem:[%s1 + $0x54] sm:$0xf]
  %v40 = vld [vmem:[%s1 + $0x58] sm:$0xf]
  %v41 = vld [vmem:[%s1 + $0x5c] sm:$0xf]
  %v42 = vld [vmem:[%s1 + $0x60] sm:$0xf]
  %v43 = vld [vmem:[%s1 + $0x64] sm:$0xf]
  %v44 = vld [vmem:[%s1 + $0x68] sm:$0xf]
  %v45 = vld [vmem:[%s1 + $0x6c] sm:$0xf]
  %v46 = vld [vmem:[%s1 + $0x70] sm:$0xf]
  %v47 = vld [vmem:[%s1 + $0x74] sm:$0xf]
  %v48 = vld [vmem:[%s1 + $0x78] sm:$0xf]
  %v49 = vld [vmem:[%s1 + $0x7c] sm:$0xf]
  %v54 = vunpack.c.l.b16 %v14
  %v55 = vunpack.c.h.b16 %v14
  %v56 = vunpack.c.l.b16 %v15
  %v57 = vunpack.c.h.b16 %v15
  %v58 = vunpack.c.l.b16 %v16
  %v59 = vunpack.c.h.b16 %v16
  %v60 = vunpack.c.l.b16 %v17
  %v61 = vunpack.c.h.b16 %v17
  %v62 = vpack.c.b16 %v56, %v54
  %v63 = vpack.c.b16 %v57, %v55
  %v64 = vpack.c.b16 %v60, %v58
  %v65 = vpack.c.b16 %v61, %v59
  %v102 = vunpack.c.l.b16 %v18
  %v103 = vunpack.c.l.b16 %v19
  %v104 = vunpack.c.l.b16 %v20
  %v105 = vunpack.c.l.b16 %v21
  %v106 = vunpack.c.l.b16 %v22
  %v107 = vunpack.c.l.b16 %v23
  %v108 = vunpack.c.l.b16 %v24
  %v109 = vunpack.c.l.b16 %v25
  %v110 = vunpack.c.l.b16 %v26
  %v111 = vunpack.c.l.b16 %v27
  %v112 = vunpack.c.l.b16 %v28
  %v113 = vunpack.c.l.b16 %v29
  %v114 = vunpack.c.l.b16 %v30
  %v115 = vunpack.c.l.b16 %v31
  %v116 = vunpack.c.l.b16 %v32
  %v117 = vunpack.c.l.b16 %v33
  %v118 = vunpack.c.l.b16 %v34
  %v119 = vunpack.c.l.b16 %v35
  %v120 = vunpack.c.l.b16 %v36
  %v121 = vunpack.c.l.b16 %v37
  %v122 = vunpack.c.l.b16 %v38
  %v123 = vunpack.c.l.b16 %v39
  %v124 = vunpack.c.l.b16 %v40
  %v125 = vunpack.c.l.b16 %v41
  %v126 = vunpack.c.l.b16 %v42
  %v127 = vunpack.c.l.b16 %v43
  %v128 = vunpack.c.l.b16 %v44
  %v129 = vunpack.c.l.b16 %v45
  %v130 = vunpack.c.l.b16 %v46
  %v131 = vunpack.c.l.b16 %v47
  %v132 = vunpack.c.l.b16 %v48
  %v133 = vunpack.c.l.b16 %v49
  %v134 = vpack.c.b16 %v103, %v102
  %v135 = vpack.c.b16 %v105, %v104
  %v136 = vpack.c.b16 %v107, %v106
  %v137 = vpack.c.b16 %v109, %v108
  %v138 = vpack.c.b16 %v111, %v110
  %v139 = vpack.c.b16 %v113, %v112
  %v140 = vpack.c.b16 %v115, %v114
  %v141 = vpack.c.b16 %v117, %v116
  %v142 = vpack.c.b16 %v119, %v118
  %v143 = vpack.c.b16 %v121, %v120
  %v144 = vpack.c.b16 %v123, %v122
  %v145 = vpack.c.b16 %v125, %v124
  %v146 = vpack.c.b16 %v127, %v126
  %v147 = vpack.c.b16 %v129, %v128
  %v148 = vpack.c.b16 %v131, %v130
  %v149 = vpack.c.b16 %v133, %v132
  %166 = vmatprep.subr.bf16.mxu0 0
  %167 = vmatpush1.bf16.msra.mxu0 %v134
  %168 = vmatprep.subr.bf16.mxu0 0
  %169 = vmatpush1.bf16.msra.mxu0 %v135
  %170 = vmatprep.subr.bf16.mxu0 0
  %171 = vmatpush1.bf16.msra.mxu0 %v136
  %172 = vmatprep.subr.bf16.mxu0 0
  %173 = vmatpush1.bf16.msra.mxu0 %v137
  %174 = vmatprep.subr.bf16.mxu0 0
  %175 = vmatpush1.bf16.msra.mxu0 %v138
  %176 = vmatprep.subr.bf16.mxu0 0
  %177 = vmatpush1.bf16.msra.mxu0 %v139
  %178 = vmatprep.subr.bf16.mxu0 0
  %179 = vmatpush1.bf16.msra.mxu0 %v140
  %180 = vmatprep.subr.bf16.mxu0 0
  %181 = vmatpush1.bf16.msra.mxu0 %v141
  %182 = vmatprep.subr.bf16.mxu0 0
  %183 = vmatpush1.bf16.msra.mxu0 %v142
  %184 = vmatprep.subr.bf16.mxu0 0
  %185 = vmatpush1.bf16.msra.mxu0 %v143
  %186 = vmatprep.subr.bf16.mxu0 0
  %187 = vmatpush1.bf16.msra.mxu0 %v144
  %188 = vmatprep.subr.bf16.mxu0 0
  %189 = vmatpush1.bf16.msra.mxu0 %v145
  %190 = vmatprep.subr.bf16.mxu0 0
  %191 = vmatpush1.bf16.msra.mxu0 %v146
  %192 = vmatprep.subr.bf16.mxu0 0
  %193 = vmatpush1.bf16.msra.mxu0 %v147
  %194 = vmatprep.subr.bf16.mxu0 0
  %195 = vmatpush1.bf16.msra.mxu0 %v148
  %196 = vmatprep.subr.bf16.mxu0 0
  %197 = vmatpush1.bf16.msra.mxu0 %v149
  %198 = vmatprep.mubr.bf16.mxu0 %v63
  %199 = vmatmul.mubr.bf16.gmra.mrb[0].mxu0 %v62
  %v200 = vpop.f32.mrb[0].mxu0
  %v201 = vadd.f32 0.0, %v200
  %v202 = vpop.f32.mrb[0].mxu0
  %v203 = vpop.f32.mrb[0].mxu0
  %v204 = vadd.f32 0.0, %v203
  %v205 = vpop.f32.mrb[0].mxu0
  %206 = vmatprep.mubr.bf16.mxu0 %v65
  %207 = vmatmul.mubr.bf16.gmra.mrb[0].mxu0 %v64
  %v208 = vpop.f32.mrb[0].mxu0
  %v209 = vadd.f32 0.0, %v208
  %v210 = vpop.f32.mrb[0].mxu0
  %v211 = vpop.f32.mrb[0].mxu0
  %v212 = vadd.f32 0.0, %v211
  %v213 = vpop.f32.mrb[0].mxu0
  %214 = vdwg.mxu0
  %215 = vst [vmem:[%s2] sm:$0xff] %v201
  %216 = vst [vmem:[%s2 + $0x8] sm:$0xff] %v204
  %217 = vst [vmem:[%s2 + $0x10] sm:$0xff] %v209
  %218 = vst [vmem:[%s2 + $0x18] sm:$0xff] %v212
  %v219 = vadd.f32 %v201, %v204
  %v220 = vadd.f32 %v219, %v209
  %v221 = vadd.f32 %v220, %v212
  %v222 = vrot.slane %v221, 4
  %v223 = vadd.f32 %v221, %v222
  %v224 = vrot.slane %v223, 2
  %v225 = vadd.f32 %v223, %v224
  %v226 = vrot.slane %v225, 1
  %v227 = vadd.f32 %v225, %v226
  %v228 = vmul.f32 %v201, %v201
  %v229 = vmul.f32 %v204, %v204
  %v230 = vmul.f32 %v209, %v209
  %v231 = vmul.f32 %v212, %v212
  %v232 = vadd.f32 %v228, %v229
  %v233 = vadd.f32 %v232, %v230
  %v234 = vadd.f32 %v233, %v231
  %v235 = vrot.slane %v234, 4
  %v236 = vadd.f32 %v234, %v235
  %v237 = vrot.slane %v236, 2
  %v238 = vadd.f32 %v236, %v237
  %v239 = vrot.slane %v238, 1
  %v240 = vadd.f32 %v238, %v239
  %v241 = vlaneseq
  %v242 = vshrl.u32 %v241, 7
  %vm243 = vcmp.eq.s32.totalorder %v242, 0
  %vm244 = vcmp.eq.s32.totalorder %v242, 1
  %v245 = vsel %vm244, %v240, 0.0
  %v246 = vsel %vm243, %v227, %v245
  %247 = vst [vmem:[%s3] sm:$0xff] %v246
  // Predicated region
  $region10: #{net_ud_forward.6} parent=0 // pred_check
    _
  $region11: #{net_ud_forward.6} parent=0 // pred_check_branch
    %249 = sbr.rel (0) target = $region13
  $region12: #{net_ud_forward.6} parent=0 // pred_region
    _
  $region13: #{net_ud_forward.6} parent=0 // pred_fallthru
    _
  // Predicated region
  $region14: #{net_ud_forward.6} parent=0 // pred_check
    _
  $region15: #{net_ud_forward.6} parent=0 // pred_check_branch
    %251 = sbr.rel (0) target = $region17
  $region16: #{net_ud_forward.6} parent=0 // pred_region
    _
  $region17: #{net_ud_forward.6} parent=0 // pred_fallthru
    _
  // Predicated region
  $region18: #{net_ud_forward.6} parent=0 // pred_check
    _
  $region19: #{net_ud_forward.6} parent=0 // pred_check_branch
    %253 = sbr.rel (0) target = $region21
  $region20: #{net_ud_forward.6} parent=0 // pred_region
    _
  $region21: #{net_ud_forward.6} parent=0 // pred_fallthru
    _
  // Predicated region
  $region22: #{net_ud_forward.6} parent=0 // pred_check
    _
  $region23: #{net_ud_forward.6} parent=0 // pred_check_branch
    %255 = sbr.rel (0) target = $region25
  $region24: #{net_ud_forward.6} parent=0 // pred_region
    _
  $region25: #{net_ud_forward.6} parent=0 // pred_fallthru
    _

// kernel: net_ud_forward.9
$region0: #{net_ud_forward.9}
  #allocation0 [shape = 'u32[]', space=smem, size = 0x4, offset = 0x4, fixed_abs, tag = 'smem constant byte address 0x4 - core index']
  #allocation1 [shape = 'u32[144,128]{1,0:T(1,128)}', space=vmem, size = 0x12000, scoped, tag = 'internal scratch']
  %s0 = inlined_call_operand.vmem [shape: f32[8,128], index: 0, kind: input, shape index: {}]
  %s1 = inlined_call_operand.vmem [shape: f32[1,128], index: 1, kind: input, shape index: {}]
  %s2 = inlined_call_operand.vmem [shape: f32[1,128], index: 2, kind: input, shape index: {}]
  %s3 = inlined_call_operand.hbm [shape: f32[8,128], index: 3, kind: output, shape index: {}]
  %s4 = sld [smem:[#allocation0]]
  $region22: #{net_ud_forward.9} parent=0
    _
  %s6 = ssub.s32 1, %s4
  %s7 = scalar_select 0, %s6, %s4
  $region1: #{net_ud_forward.9} parent=0
    #allocation2 [shape = 'u8[4096]{0}', space=vmem, size = 0x1000, scoped, tag = 'output window, operand 0, single buffered']
    #allocation3 [shape = 's32[1]{0}', space=sflag, size = 0x4, scoped, tag = 'scoped memory for net_ud_forward.9']
    %8 = vsyncpa [#allocation3], 0
    // Predicated region
    $region2: #{net_ud_forward.9} parent=1 // pred_check
      _
    $region3: #{net_ud_forward.9} parent=1 // pred_check_branch
      %10 = sbr.rel (0) target = $region5
    $region4: #{net_ud_forward.9} parent=1 // pred_region
      _
    $region5: #{net_ud_forward.9} parent=1 // pred_fallthru
      _
    // Predicated region
    $region6: #{net_ud_forward.9} parent=1 // pred_check
      _
    $region7: #{net_ud_forward.9} parent=1 // pred_check_branch
      %12 = sbr.rel (0) target = $region9
    $region8: #{net_ud_forward.9} parent=1 // pred_region
      _
    $region9: #{net_ud_forward.9} parent=1 // pred_fallthru
      _
    // Predicated region
    $region10: #{net_ud_forward.9} parent=1 // pred_check
      _
    $region11: #{net_ud_forward.9} parent=1 // pred_check_branch
      %14 = sbr.rel (0) target = $region13
    $region12: #{net_ud_forward.9} parent=1 // pred_region
      _
    $region13: #{net_ud_forward.9} parent=1 // pred_fallthru
      _
    %v15 = vld [vmem:[%s0] sm:$0xff]
    %v16 = vld [vmem:[%s1] sm:$0x1]
    %v18 = vlaneseq
    %v19 = vshrl.u32 %v18, 7
    %v20 = vsub.s32 0, %v19
    %v21 = vrot.slane %v16, %v20
    %v23 = vmul.f32 %v15, %v21
    %v24 = vld [vmem:[%s2] sm:$0x1]
    %v26 = vlaneseq
    %v27 = vshrl.u32 %v26, 7
    %v28 = vsub.s32 0, %v27
    %v29 = vrot.slane %v24, %v28
    %v31 = vadd.f32 %v23, %v29
    %vm32 = vcmp.gt.f32.partialorder %v31, 0.0
    %v33 = vmul.f32 %v31, 0.2
    %v34 = vsel %vm32, %v31, %v33
    %35 = vst [vmem:[#allocation2] sm:$0xff] %v34
    // Predicated region
    $region14: #{net_ud_forward.9} parent=1 // pred_check
      _
    $region15: #{net_ud_forward.9} parent=1 // pred_check_branch
      %37 = sbr.rel (0) target = $region17
    $region16: #{net_ud_forward.9} parent=1 // pred_region
      %s39 = ssub.s32 128, 128
      %40 = vsyncadd [#allocation3], %s39
      %s42 = sshll.u32 [#allocation2], 4
      %s43 = int_to_ptr.vmem [resolvable:$true] %s42
      %45 = dma.vmem_to_hbm [thread:$0]  %s43, 128, %s3, [#allocation3]
    $region17: #{net_ud_forward.9} parent=1 // pred_fallthru
      _
    // Predicated region
    $region18: #{net_ud_forward.9} parent=1 // pred_check
      _
    $region19: #{net_ud_forward.9} parent=1 // pred_check_branch
      %47 = sbr.rel (0) target = $region21
    $region20: #{net_ud_forward.9} parent=1 // pred_region
      %48 = dma.done [#allocation3], 128
    $region21: #{net_ud_forward.9} parent=1 // pred_fallthru
      _
    %49 = vsyncpa [#allocation3], 1

// kernel: net_ud_forward.8
$region0: #{net_ud_forward.8}
  #allocation0 [shape = 'u32[]', space=smem, size = 0x4, offset = 0x4, fixed_abs, tag = 'smem constant byte address 0x4 - core index']
  #allocation1 [shape = 'u32[144,128]{1,0:T(1,128)}', space=vmem, size = 0x12000, scoped, tag = 'internal scratch']
  %s0 = inlined_call_operand.vmem [shape: bf16[8,512], index: 0, kind: input, shape index: {}]
  %s1 = inlined_call_operand.vmem [shape: bf16[512,128], index: 1, kind: input, shape index: {}]
  %s2 = inlined_call_operand.vmem [shape: f32[8,128], index: 2, kind: output, shape index: {0}]
  %s3 = inlined_call_operand.vmem [shape: f32[1,8,128], index: 3, kind: output, shape index: {1}]
  %4 = xla_tuple %s2, %s3
  %s5 = sld [smem:[#allocation0]]
  $region26: #{net_ud_forward.8} parent=0
    _
  %s7 = ssub.s32 1, %s5
  %s8 = scalar_select 0, %s7, %s5
  // Predicated region
  $region2: #{net_ud_forward.8} parent=0 // pred_check
    _
  $region3: #{net_ud_forward.8} parent=0 // pred_check_branch
    %10 = sbr.rel (0) target = $region5
  $region4: #{net_ud_forward.8} parent=0 // pred_region
    _
  $region5: #{net_ud_forward.8} parent=0 // pred_fallthru
    _
  // Predicated region
  $region6: #{net_ud_forward.8} parent=0 // pred_check
    _
  $region7: #{net_ud_forward.8} parent=0 // pred_check_branch
    %12 = sbr.rel (0) target = $region9
  $region8: #{net_ud_forward.8} parent=0 // pred_region
    _
  $region9: #{net_ud_forward.8} parent=0 // pred_fallthru
    _
  %v14 = vld [vmem:[%s0] sm:$0xff]
  %v15 = vld [vmem:[%s0 + $0x8] sm:$0xff]
  %v16 = vld [vmem:[%s1] sm:$0xf]
  %v17 = vld [vmem:[%s1 + $0x4] sm:$0xf]
  %v18 = vld [vmem:[%s1 + $0x8] sm:$0xf]
  %v19 = vld [vmem:[%s1 + $0xc] sm:$0xf]
  %v20 = vld [vmem:[%s1 + $0x10] sm:$0xf]
  %v21 = vld [vmem:[%s1 + $0x14] sm:$0xf]
  %v22 = vld [vmem:[%s1 + $0x18] sm:$0xf]
  %v23 = vld [vmem:[%s1 + $0x1c] sm:$0xf]
  %v24 = vld [vmem:[%s1 + $0x20] sm:$0xf]
  %v25 = vld [vmem:[%s1 + $0x24] sm:$0xf]
  %v26 = vld [vmem:[%s1 + $0x28] sm:$0xf]
  %v27 = vld [vmem:[%s1 + $0x2c] sm:$0xf]
  %v28 = vld [vmem:[%s1 + $0x30] sm:$0xf]
  %v29 = vld [vmem:[%s1 + $0x34] sm:$0xf]
  %v30 = vld [vmem:[%s1 + $0x38] sm:$0xf]
  %v31 = vld [vmem:[%s1 + $0x3c] sm:$0xf]
  %v32 = vld [vmem:[%s1 + $0x40] sm:$0xf]
  %v33 = vld [vmem:[%s1 + $0x44] sm:$0xf]
  %v34 = vld [vmem:[%s1 + $0x48] sm:$0xf]
  %v35 = vld [vmem:[%s1 + $0x4c] sm:$0xf]
  %v36 = vld [vmem:[%s1 + $0x50] sm:$0xf]
  %v37 = vld [vmem:[%s1 + $0x54] sm:$0xf]
  %v38 = vld [vmem:[%s1 + $0x58] sm:$0xf]
  %v39 = vld [vmem:[%s1 + $0x5c] sm:$0xf]
  %v40 = vld [vmem:[%s1 + $0x60] sm:$0xf]
  %v41 = vld [vmem:[%s1 + $0x64] sm:$0xf]
  %v42 = vld [vmem:[%s1 + $0x68] sm:$0xf]
  %v43 = vld [vmem:[%s1 + $0x6c] sm:$0xf]
  %v44 = vld [vmem:[%s1 + $0x70] sm:$0xf]
  %v45 = vld [vmem:[%s1 + $0x74] sm:$0xf]
  %v46 = vld [vmem:[%s1 + $0x78] sm:$0xf]
  %v47 = vld [vmem:[%s1 + $0x7c] sm:$0xf]
  %v48 = vld [vmem:[%s1 + $0x80] sm:$0xf]
  %v49 = vld [vmem:[%s1 + $0x84] sm:$0xf]
  %v50 = vld [vmem:[%s1 + $0x88] sm:$0xf]
  %v51 = vld [vmem:[%s1 + $0x8c] sm:$0xf]
  %v52 = vld [vmem:[%s1 + $0x90] sm:$0xf]
  %v53 = vld [vmem:[%s1 + $0x94] sm:$0xf]
  %v54 = vld [vmem:[%s1 + $0x98] sm:$0xf]
  %v55 = vld [vmem:[%s1 + $0x9c] sm:$0xf]
  %v56 = vld [vmem:[%s1 + $0xa0] sm:$0xf]
  %v57 = vld [vmem:[%s1 + $0xa4] sm:$0xf]
  %v58 = vld [vmem:[%s1 + $0xa8] sm:$0xf]
  %v59 = vld [vmem:[%s1 + $0xac] sm:$0xf]
  %v60 = vld [vmem:[%s1 + $0xb0] sm:$0xf]
  %v61 = vld [vmem:[%s1 + $0xb4] sm:$0xf]
  %v62 = vld [vmem:[%s1 + $0xb8] sm:$0xf]
  %v63 = vld [vmem:[%s1 + $0xbc] sm:$0xf]
  %v64 = vld [vmem:[%s1 + $0xc0] sm:$0xf]
  %v65 = vld [vmem:[%s1 + $0xc4] sm:$0xf]
  %v66 = vld [vmem:[%s1 + $0xc8] sm:$0xf]
  %v67 = vld [vmem:[%s1 + $0xcc] sm:$0xf]
  %v68 = vld [vmem:[%s1 + $0xd0] sm:$0xf]
  %v69 = vld [vmem:[%s1 + $0xd4] sm:$0xf]
  %v70 = vld [vmem:[%s1 + $0xd8] sm:$0xf]
  %v71 = vld [vmem:[%s1 + $0xdc] sm:$0xf]
  %v72 = vld [vmem:[%s1 + $0xe0] sm:$0xf]
  %v73 = vld [vmem:[%s1 + $0xe4] sm:$0xf]
  %v74 = vld [vmem:[%s1 + $0xe8] sm:$0xf]
  %v75 = vld [vmem:[%s1 + $0xec] sm:$0xf]
  %v76 = vld [vmem:[%s1 + $0xf0] sm:$0xf]
  %v77 = vld [vmem:[%s1 + $0xf4] sm:$0xf]
  %v78 = vld [vmem:[%s1 + $0xf8] sm:$0xf]
  %v79 = vld [vmem:[%s1 + $0xfc] sm:$0xf]
  %v82 = vunpack.c.l.b16 %v14
  %v83 = vunpack.c.h.b16 %v14
  %v84 = vunpack.c.l.b16 %v15
  %v85 = vunpack.c.h.b16 %v15
  %v86 = vpack.c.b16 %v82, %v82
  %v87 = vpack.c.b16 %v83, %v83
  %v88 = vpack.c.b16 %v84, %v84
  %v89 = vpack.c.b16 %v85, %v85
  %v158 = vunpack.c.l.b16 %v16
  %v159 = vunpack.c.l.b16 %v17
  %v160 = vunpack.c.l.b16 %v18
  %v161 = vunpack.c.l.b16 %v19
  %v162 = vunpack.c.l.b16 %v20
  %v163 = vunpack.c.l.b16 %v21
  %v164 = vunpack.c.l.b16 %v22
  %v165 = vunpack.c.l.b16 %v23
  %v166 = vunpack.c.l.b16 %v24
  %v167 = vunpack.c.l.b16 %v25
  %v168 = vunpack.c.l.b16 %v26
  %v169 = vunpack.c.l.b16 %v27
  %v170 = vunpack.c.l.b16 %v28
  %v171 = vunpack.c.l.b16 %v29
  %v172 = vunpack.c.l.b16 %v30
  %v173 = vunpack.c.l.b16 %v31
  %v174 = vunpack.c.l.b16 %v32
  %v175 = vunpack.c.l.b16 %v33
  %v176 = vunpack.c.l.b16 %v34
  %v177 = vunpack.c.l.b16 %v35
  %v178 = vunpack.c.l.b16 %v36
  %v179 = vunpack.c.l.b16 %v37
  %v180 = vunpack.c.l.b16 %v38
  %v181 = vunpack.c.l.b16 %v39
  %v182 = vunpack.c.l.b16 %v40
  %v183 = vunpack.c.l.b16 %v41
  %v184 = vunpack.c.l.b16 %v42
  %v185 = vunpack.c.l.b16 %v43
  %v186 = vunpack.c.l.b16 %v44
  %v187 = vunpack.c.l.b16 %v45
  %v188 = vunpack.c.l.b16 %v46
  %v189 = vunpack.c.l.b16 %v47
  %v190 = vunpack.c.l.b16 %v48
  %v191 = vunpack.c.l.b16 %v49
  %v192 = vunpack.c.l.b16 %v50
  %v193 = vunpack.c.l.b16 %v51
  %v194 = vunpack.c.l.b16 %v52
  %v195 = vunpack.c.l.b16 %v53
  %v196 = vunpack.c.l.b16 %v54
  %v197 = vunpack.c.l.b16 %v55
  %v198 = vunpack.c.l.b16 %v56
  %v199 = vunpack.c.l.b16 %v57
  %v200 = vunpack.c.l.b16 %v58
  %v201 = vunpack.c.l.b16 %v59
  %v202 = vunpack.c.l.b16 %v60
  %v203 = vunpack.c.l.b16 %v61
  %v204 = vunpack.c.l.b16 %v62
  %v205 = vunpack.c.l.b16 %v63
  %v206 = vunpack.c.l.b16 %v64
  %v207 = vunpack.c.l.b16 %v65
  %v208 = vunpack.c.l.b16 %v66
  %v209 = vunpack.c.l.b16 %v67
  %v210 = vunpack.c.l.b16 %v68
  %v211 = vunpack.c.l.b16 %v69
  %v212 = vunpack.c.l.b16 %v70
  %v213 = vunpack.c.l.b16 %v71
  %v214 = vunpack.c.l.b16 %v72
  %v215 = vunpack.c.l.b16 %v73
  %v216 = vunpack.c.l.b16 %v74
  %v217 = vunpack.c.l.b16 %v75
  %v218 = vunpack.c.l.b16 %v76
  %v219 = vunpack.c.l.b16 %v77
  %v220 = vunpack.c.l.b16 %v78
  %v221 = vunpack.c.l.b16 %v79
  %v222 = vpack.c.b16 %v159, %v158
  %v223 = vpack.c.b16 %v161, %v160
  %v224 = vpack.c.b16 %v163, %v162
  %v225 = vpack.c.b16 %v165, %v164
  %v226 = vpack.c.b16 %v167, %v166
  %v227 = vpack.c.b16 %v169, %v168
  %v228 = vpack.c.b16 %v171, %v170
  %v229 = vpack.c.b16 %v173, %v172
  %v230 = vpack.c.b16 %v175, %v174
  %v231 = vpack.c.b16 %v177, %v176
  %v232 = vpack.c.b16 %v179, %v178
  %v233 = vpack.c.b16 %v181, %v180
  %v234 = vpack.c.b16 %v183, %v182
  %v235 = vpack.c.b16 %v185, %v184
  %v236 = vpack.c.b16 %v187, %v186
  %v237 = vpack.c.b16 %v189, %v188
  %v238 = vpack.c.b16 %v191, %v190
  %v239 = vpack.c.b16 %v193, %v192
  %v240 = vpack.c.b16 %v195, %v194
  %v241 = vpack.c.b16 %v197, %v196
  %v242 = vpack.c.b16 %v199, %v198
  %v243 = vpack.c.b16 %v201, %v200
  %v244 = vpack.c.b16 %v203, %v202
  %v245 = vpack.c.b16 %v205, %v204
  %v246 = vpack.c.b16 %v207, %v206
  %v247 = vpack.c.b16 %v209, %v208
  %v248 = vpack.c.b16 %v211, %v210
  %v249 = vpack.c.b16 %v213, %v212
  %v250 = vpack.c.b16 %v215, %v214
  %v251 = vpack.c.b16 %v217, %v216
  %v252 = vpack.c.b16 %v219, %v218
  %v253 = vpack.c.b16 %v221, %v220
  %286 = vmatprep.subr.bf16.mxu0 0
  %287 = vmatpush1.bf16.msra.mxu0 %v222
  %288 = vmatprep.subr.bf16.mxu0 0
  %289 = vmatpush1.bf16.msra.mxu0 %v223
  %290 = vmatprep.subr.bf16.mxu0 0
  %291 = vmatpush1.bf16.msra.mxu0 %v224
  %292 = vmatprep.subr.bf16.mxu0 0
  %293 = vmatpush1.bf16.msra.mxu0 %v225
  %294 = vmatprep.subr.bf16.mxu0 0
  %295 = vmatpush1.bf16.msra.mxu0 %v226
  %296 = vmatprep.subr.bf16.mxu0 0
  %297 = vmatpush1.bf16.msra.mxu0 %v227
  %298 = vmatprep.subr.bf16.mxu0 0
  %299 = vmatpush1.bf16.msra.mxu0 %v228
  %300 = vmatprep.subr.bf16.mxu0 0
  %301 = vmatpush1.bf16.msra.mxu0 %v229
  %302 = vmatprep.subr.bf16.mxu0 0
  %303 = vmatpush1.bf16.msra.mxu0 %v230
  %304 = vmatprep.subr.bf16.mxu0 0
  %305 = vmatpush1.bf16.msra.mxu0 %v231
  %306 = vmatprep.subr.bf16.mxu0 0
  %307 = vmatpush1.bf16.msra.mxu0 %v232
  %308 = vmatprep.subr.bf16.mxu0 0
  %309 = vmatpush1.bf16.msra.mxu0 %v233
  %310 = vmatprep.subr.bf16.mxu0 0
  %311 = vmatpush1.bf16.msra.mxu0 %v234
  %312 = vmatprep.subr.bf16.mxu0 0
  %313 = vmatpush1.bf16.msra.mxu0 %v235
  %314 = vmatprep.subr.bf16.mxu0 0
  %315 = vmatpush1.bf16.msra.mxu0 %v236
  %316 = vmatprep.subr.bf16.mxu0 0
  %317 = vmatpush1.bf16.msra.mxu0 %v237
  %318 = vmatprep.mubr.bf16.mxu0 %v87
  %319 = vmatmul.mubr.bf16.gmra.mrb[0].mxu0 %v86
  %v320 = vpop.f32.mrb[0].mxu0
  %v321 = vadd.f32 0.0, %v320
  %v322 = vpop.f32.mrb[0].mxu0
  %v323 = vpop.f32.mrb[0].mxu0
  %v324 = vpop.f32.mrb[0].mxu0
  %325 = vdwg.mxu0
  %326 = vmatprep.subr.bf16.mxu0 0
  %327 = vmatpush1.bf16.msra.mxu0 %v238
  %328 = vmatprep.subr.bf16.mxu0 0
  %329 = vmatpush1.bf16.msra.mxu0 %v239
  %330 = vmatprep.subr.bf16.mxu0 0
  %331 = vmatpush1.bf16.msra.mxu0 %v240
  %332 = vmatprep.subr.bf16.mxu0 0
  %333 = vmatpush1.bf16.msra.mxu0 %v241
  %334 = vmatprep.subr.bf16.mxu0 0
  %335 = vmatpush1.bf16.msra.mxu0 %v242
  %336 = vmatprep.subr.bf16.mxu0 0
  %337 = vmatpush1.bf16.msra.mxu0 %v243
  %338 = vmatprep.subr.bf16.mxu0 0
  %339 = vmatpush1.bf16.msra.mxu0 %v244
  %340 = vmatprep.subr.bf16.mxu0 0
  %341 = vmatpush1.bf16.msra.mxu0 %v245
  %342 = vmatprep.subr.bf16.mxu0 0
  %343 = vmatpush1.bf16.msra.mxu0 %v246
  %344 = vmatprep.subr.bf16.mxu0 0
  %345 = vmatpush1.bf16.msra.mxu0 %v247
  %346 = vmatprep.subr.bf16.mxu0 0
  %347 = vmatpush1.bf16.msra.mxu0 %v248
  %348 = vmatprep.subr.bf16.mxu0 0
  %349 = vmatpush1.bf16.msra.mxu0 %v249
  %350 = vmatprep.subr.bf16.mxu0 0
  %351 = vmatpush1.bf16.msra.mxu0 %v250
  %352 = vmatprep.subr.bf16.mxu0 0
  %353 = vmatpush1.bf16.msra.mxu0 %v251
  %354 = vmatprep.subr.bf16.mxu0 0
  %355 = vmatpush1.bf16.msra.mxu0 %v252
  %356 = vmatprep.subr.bf16.mxu0 0
  %357 = vmatpush1.bf16.msra.mxu0 %v253
  %358 = vmatprep.mubr.bf16.mxu0 %v89
  %359 = vmatmul.mubr.bf16.gmra.mrb[0].mxu0 %v88
  %v360 = vpop.f32.mrb[0].mxu0
  %v361 = vadd.f32 %v321, %v360
  %v362 = vpop.f32.mrb[0].mxu0
  %v363 = vpop.f32.mrb[0].mxu0
  %v364 = vpop.f32.mrb[0].mxu0
  %365 = vdwg.mxu0
  %366 = vst [vmem:[%s2] sm:$0xff] %v361
  %v367 = vrot.slane %v361, 4
  %v368 = vadd.f32 %v361, %v367
  %v369 = vrot.slane %v368, 2
  %v370 = vadd.f32 %v368, %v369
  %v371 = vrot.slane %v370, 1
  %v372 = vadd.f32 %v370, %v371
  %v373 = vmul.f32 %v361, %v361
  %v374 = vrot.slane %v373, 4
  %v375 = vadd.f32 %v373, %v374
  %v376 = vrot.slane %v375, 2
  %v377 = vadd.f32 %v375, %v376
  %v378 = vrot.slane %v377, 1
  %v379 = vadd.f32 %v377, %v378
  %v380 = vlaneseq
  %v381 = vshrl.u32 %v380, 7
  %vm382 = vcmp.eq.s32.totalorder %v381, 0
  %vm383 = vcmp.eq.s32.totalorder %v381, 1
  %v384 = vsel %vm383, %v379, 0.0
  %v385 = vsel %vm382, %v372, %v384
  %386 = vst [vmem:[%s3] sm:$0xff] %v385
  // Predicated region
  $region10: #{net_ud_forward.8} parent=0 // pred_check
    _
  $region11: #{net_ud_forward.8} parent=0 // pred_check_branch
    %388 = sbr.rel (0) target = $region13
  $region12: #{net_ud_forward.8} parent=0 // pred_region
    _
  $region13: #{net_ud_forward.8} parent=0 // pred_fallthru
    _
  // Predicated region
  $region14: #{net_ud_forward.8} parent=0 // pred_check
    _
  $region15: #{net_ud_forward.8} parent=0 // pred_check_branch
    %390 = sbr.rel (0) target = $region17
  $region16: #{net_ud_forward.8} parent=0 // pred_region
    _
  $region17: #{net_ud_forward.8} parent=0 // pred_fallthru
    _
  // Predicated region
  $region18: #{net_ud_forward.8} parent=0 // pred_check
    _
  $region19: #{net_ud_forward.8} parent=0 // pred_check_branch
    %392 = sbr.rel (0) target = $region21
  $region20: #{net_ud_forward.8} parent=0 // pred_region
    _
  $region21: #{net_ud_forward.8} parent=0 // pred_fallthru
    _
  // Predicated region
  $region22: #{net_ud_forward.8} parent=0 // pred_check
    _
  $region23: #{net_ud_forward.8} parent=0 // pred_check_branch
    %394 = sbr.rel (0) target = $region25
  $region24: #{net_ud_forward.8} parent=0 // pred_region
    _
  $region25: #{net_ud_forward.8} parent=0 // pred_fallthru
    _

</llo_original>
